<compile_context>
chip_gen: v5e
topology: v5e:2x2
jax: 0.10.0
libtpu: 0.0.40
codegen_flags: <defaults>
</compile_context>

<pallas_src>
import jax
import jax.numpy as jnp
from jax.experimental import pallas as pl
from jax.experimental.pallas import tpu as pltpu

# Parameters from myModel.__init__ (kept as Python ints, like the module,
# so weak typing preserves the input dtype on the common paths).
W_PARAM = 5
B_PARAM = 3

_LANE = 128


def _affine_kernel(x_ref, o_ref):
    # Pure VPU elementwise hot path on the current VMEM tile.
    o_ref[...] = (x_ref[...] * W_PARAM + B_PARAM).astype(o_ref.dtype)


def _block_budget():
    """(target_block_bytes, vmem_limit_bytes) tuned per TPU generation."""
    try:
        kind = jax.devices()[0].device_kind.lower()
    except Exception:  # pragma: no cover - defensive; fall through to default
        kind = ""
    if "v7" in kind:
        # 12 MiB block -> 48 MiB double-buffered footprint, under 64 MiB/TC.
        return 12 * 1024 * 1024, 56 * 1024 * 1024
    if "v6" in kind:
        # 16 MiB block -> 64 MiB footprint, well under 128 MiB physical VMEM.
        return 16 * 1024 * 1024, 80 * 1024 * 1024
    if "v5" in kind:
        # 8 MiB block; explicit limit avoids the 16 MiB scoped default.
        return 8 * 1024 * 1024, 40 * 1024 * 1024
    # Unknown device: conservative budget that fits every generation.
    return 8 * 1024 * 1024, 48 * 1024 * 1024


def _run_2d(x2d: jax.Array) -> jax.Array:
    """Run the affine kernel over a lane-dense 2-D slab [rows, lanes]."""
    rows, lanes = x2d.shape
    itemsize = jnp.dtype(x2d.dtype).itemsize

    # Sublane packing: 8 rows/vreg for 32-bit, 16 for 16-bit, 32 for 8-bit.
    sublane = max(8, 32 // itemsize)

    target_block_bytes, vmem_limit = _block_budget()

    # Pick tile_rows for ~target_block_bytes per block, multiple of `sublane`.
    tile_rows = target_block_bytes // (lanes * itemsize)
    tile_rows = max(sublane, (tile_rows // sublane) * sublane)

    if tile_rows >= rows:
        if rows >= 2 * sublane:
            # Keep at least 2 blocks so both v7x TensorCores get work.
            half = rows // 2
            tile_rows = max(sublane, (half // sublane) * sublane)
        else:
            # Tiny input: single full-extent block (any row count is legal).
            tile_rows = rows

    grid = (pl.cdiv(rows, tile_rows),)  # partial last block is masked by Pallas

    return pl.pallas_call(
        _affine_kernel,
        out_shape=jax.ShapeDtypeStruct((rows, lanes), x2d.dtype),
        grid=grid,
        in_specs=[pl.BlockSpec((tile_rows, lanes), lambda i: (i, 0))],
        out_specs=pl.BlockSpec((tile_rows, lanes), lambda i: (i, 0)),
        compiler_params=pltpu.CompilerParams(
            dimension_semantics=("parallel",),  # megacore sharding on v7x
            vmem_limit_bytes=vmem_limit,
        ),
    )(x2d)


def my_model_forward(x: jax.Array) -> jax.Array:
    """Forward of myModel: y = 5 * x + 3 (elementwise)."""
    orig_shape = x.shape
    n = x.size
    if n == 0:
        return x

    # Widest lane-dense last dim that divides n exactly -> free relayout,
    # HBM traffic stays at the 2n minimum.
    lanes = None
    for cand in (2048, 1024, 512, 256, 128):
        if n % cand == 0:
            lanes = cand
            break

    if lanes is not None:
        rows = n // lanes
        y2d = _run_2d(jnp.reshape(x, (rows, lanes)))
        return jnp.reshape(y2d, orig_shape)

    # Rare path: n not a multiple of 128. Main+tail split (no padded copy):
    # Pallas covers the first n//128*128 elements, the <128-element tail is
    # computed by plain jnp/XLA, then both are stitched back together.
    x_flat = jnp.reshape(x, (-1,))
    n_main = (n // _LANE) * _LANE
    if n_main == 0:
        # Sub-128-element input: not worth a kernel launch.
        y_flat = x_flat * W_PARAM + B_PARAM
    else:
        y_main = _run_2d(jnp.reshape(x_flat[:n_main], (n_main // _LANE, _LANE)))
        y_tail = x_flat[n_main:] * W_PARAM + B_PARAM
        y_flat = jnp.concatenate([jnp.reshape(y_main, (-1,)), y_tail])
    return jnp.reshape(y_flat, orig_shape)


if __name__ == "__main__":
    key = jax.random.PRNGKey(0)
    x = jax.random.normal(key, (2, 4, 16, 16), dtype=jnp.float32)

    y = my_model_forward(x)
    jax.block_until_ready(y)

    # Correctness check against the reference semantics of myModel.forward.
    y_ref = 5.0 * x + 3.0
    assert y.shape == x.shape and y.dtype == x.dtype
    assert jnp.allclose(y, y_ref, atol=1e-6), "mismatch vs reference"

    # Also exercise the main+tail fallback path (n not a multiple of 128).
    x_odd = jax.random.normal(jax.random.PRNGKey(1), (3, 5, 7), dtype=jnp.float32)
    y_odd = my_model_forward(x_odd)
    jax.block_until_ready(y_odd)
    assert jnp.allclose(y_odd, 5.0 * x_odd + 3.0, atol=1e-6), "mismatch (tail path)"

    print("KERNEL_OK")
</pallas_src>

<mosaic_0001>
module attributes {stable_mosaic.version = 11 : i64} {
  func.func @_affine_kernel(%arg0: i32, %arg1: memref<1x2048xf32, #tpu.memory_space<vmem>>, %arg2: memref<1x2048xf32, #tpu.memory_space<vmem>>) attributes {dimension_semantics = [#tpu.dimension_semantics<parallel>], iteration_bounds = array<i64: 1>, scalar_prefetch = 0 : i64, scratch_operands = 0 : i64, tpu.core_type = #tpu.core_type<tc>, window_params = [{transform_indices = @transform_0, window_bounds = array<i64: 1, 2048>}, {transform_indices = @transform_1, window_bounds = array<i64: 1, 2048>}]} {
    %c0 = arith.constant 0 : index
    %c0_0 = arith.constant 0 : index
    %0 = vector.load %arg1[%c0, %c0_0] : memref<1x2048xf32, #tpu.memory_space<vmem>>, vector<1x2048xf32>
    %cst = arith.constant 5.000000e+00 : f32
    %1 = vector.broadcast %cst : f32 to vector<1x2048xf32>
    %2 = arith.mulf %0, %1 : vector<1x2048xf32>
    %cst_1 = arith.constant 3.000000e+00 : f32
    %3 = vector.broadcast %cst_1 : f32 to vector<1x2048xf32>
    %4 = arith.addf %2, %3 : vector<1x2048xf32>
    %c0_2 = arith.constant 0 : index
    %c0_3 = arith.constant 0 : index
    %5 = vector.load %arg2[%c0_2, %c0_3] : memref<1x2048xf32, #tpu.memory_space<vmem>>, vector<1x2048xf32>
    tpu.vector_store %arg2[%c0_2, %c0_3], %4 {strides = array<i32>} : memref<1x2048xf32, #tpu.memory_space<vmem>>, vector<1x2048xf32>,
    return
  }
  func.func @transform_0(%arg0: i32) -> (i32, i32) {
    %c0_i32 = arith.constant 0 : i32
    %c0_i32_0 = arith.constant 0 : i32
    return %arg0, %c0_i32 : i32, i32
  }
  func.func @transform_1(%arg0: i32) -> (i32, i32) {
    %c0_i32 = arith.constant 0 : i32
    %c0_i32_0 = arith.constant 0 : i32
    return %arg0, %c0_i32 : i32, i32
  }
}

</mosaic_0001>

<llo_original>
// kernel: tpu_custom_call.1
$region0: #{tpu_custom_call.1}
  #allocation0 [shape = 'u32[]', space=smem, size = 0x4, offset = 0x4, fixed_abs, tag = 'smem constant byte address 0x4 - core index']
  #allocation1 [shape = 'u32[72,128]{1,0:T(1,128)}', space=vmem, size = 0x9000, scoped, tag = 'internal scratch']
  %s0 = inlined_call_operand.hbm [shape: f32[1,2048], index: 0, kind: input, shape index: {}]
  %s1 = inlined_call_operand.hbm [shape: f32[1,2048], index: 1, kind: output, shape index: {}]
  %s2 = sld [smem:[#allocation0]]
  $region18: #{tpu_custom_call.1} parent=0
    _
  %s4 = ssub.s32 1, %s2
  %s5 = scalar_select 0, %s4, %s2
  $region1: #{tpu_custom_call.1} parent=0
    #allocation2 [shape = 'u8[8192]{0}', space=vmem, size = 0x2000, scoped, tag = 'input window, operand 0, single buffered']
    #allocation3 [shape = 's32[1]{0}', space=sflag, size = 0x4, scoped, tag = 'scoped memory for tpu_custom_call.1']
    #allocation4 [shape = 's32[1]{0}', space=sflag, size = 0x4, scoped, tag = 'scoped memory for tpu_custom_call.1']
    #allocation5 [shape = 'u8[8192]{0}', space=vmem, size = 0x2000, scoped, tag = 'output window, operand 0, single buffered']
    %6 = vsyncpa [#allocation3], 0
    %7 = vsyncpa [#allocation4], 0
    // Predicated region
    $region2: #{tpu_custom_call.1} parent=1 // pred_check
      _
    $region3: #{tpu_custom_call.1} parent=1 // pred_check_branch
      %9 = sbr.rel (0) target = $region5
    $region4: #{tpu_custom_call.1} parent=1 // pred_region
      %11 = vsyncadd [#allocation3], 0
      %s13 = sshll.u32 %s0, 4
      %s14 = int_to_ptr.hbm [resolvable:$true] %s13
      %s15 = sshll.u32 [#allocation2], 4
      %s16 = int_to_ptr.vmem [resolvable:$true] %s15
      %18 = dma.hbm_to_vmem [thread:$0]  %s14, 256, %s16, [#allocation3]
    $region5: #{tpu_custom_call.1} parent=1 // pred_fallthru
      _
    // Predicated region
    $region6: #{tpu_custom_call.1} parent=1 // pred_check
      _
    $region7: #{tpu_custom_call.1} parent=1 // pred_check_branch
      %20 = sbr.rel (0) target = $region9
    $region8: #{tpu_custom_call.1} parent=1 // pred_region
      %22 = dma.done [#allocation3], 256
    $region9: #{tpu_custom_call.1} parent=1 // pred_fallthru
      _
    %v23 = vld [vmem:[#allocation2] sm:$0xff]
    %v24 = vld [vmem:[#allocation2 + $0x8] sm:$0xff]
    %v25 = vmul.f32 %v23, 5.0
    %v26 = vmul.f32 %v24, 5.0
    %v27 = vadd.f32 %v25, 3.0
    %v28 = vadd.f32 %v26, 3.0
    %29 = vst [vmem:[#allocation5] sm:$0xff] %v27
    %30 = vst [vmem:[#allocation5 + $0x8] sm:$0xff] %v28
    // Predicated region
    $region10: #{tpu_custom_call.1} parent=1 // pred_check
      _
    $region11: #{tpu_custom_call.1} parent=1 // pred_check_branch
      %32 = sbr.rel (0) target = $region13
    $region12: #{tpu_custom_call.1} parent=1 // pred_region
      %34 = vsyncadd [#allocation4], 0
      %s36 = sshll.u32 [#allocation5], 4
      %s37 = int_to_ptr.vmem [resolvable:$true] %s36
      %s38 = sshll.u32 %s1, 4
      %s39 = int_to_ptr.hbm [resolvable:$true] %s38
      %41 = dma.vmem_to_hbm [thread:$0]  %s37, 256, %s39, [#allocation4]
    $region13: #{tpu_custom_call.1} parent=1 // pred_fallthru
      _
    // Predicated region
    $region14: #{tpu_custom_call.1} parent=1 // pred_check
      _
    $region15: #{tpu_custom_call.1} parent=1 // pred_check_branch
      %43 = sbr.rel (0) target = $region17
    $region16: #{tpu_custom_call.1} parent=1 // pred_region
      %45 = dma.done [#allocation4], 256
    $region17: #{tpu_custom_call.1} parent=1 // pred_fallthru
      _
    %46 = vsyncpa [#allocation3], 1
    %47 = vsyncpa [#allocation4], 1

</llo_original>
